<compile_context>
chip_gen: v7x
topology: tpu7x:2x2x1
jax: 0.10.0
libtpu: 0.0.40
codegen_flags: <defaults>
</compile_context>

<pallas_src>
import functools

import jax
import jax.numpy as jnp
from jax.experimental import pallas as pl
from jax.experimental.pallas import tpu as pltpu


def _round_up(x, m):
    return (x + m - 1) // m * m


def _noise_predictor_kernel(x_ref, w1_ref, b1_ref, w2_ref, b2_ref, o_ref):
    # fc1: (TB, H) @ (H, H) with f32 accumulation on the MXU.
    x = x_ref[...].astype(w1_ref.dtype)
    h = jnp.dot(x, w1_ref[...], preferred_element_type=jnp.float32)
    h = h + b1_ref[...]                               # bias in f32
    # ELU (alpha = 1.0, PyTorch default).  Clamp before exp so the untaken
    # where-branch never produces inf; abs error vs expm1 is ~1e-7 in f32.
    h = jnp.where(h > 0, h, jnp.exp(jnp.minimum(h, 0.0)) - 1.0)
    # fc2: (TB, H) @ (H, O) with f32 accumulation on the MXU.
    y = jnp.dot(h.astype(w2_ref.dtype), w2_ref[...],
                preferred_element_type=jnp.float32)
    y = y + b2_ref[...]                               # bias in f32
    o_ref[...] = jnp.maximum(y, 0.0).astype(o_ref.dtype)   # ReLU


def prepare_params(w1, b1, w2, b2, matmul_dtype=jnp.bfloat16):
    """One-time (model-init) parameter prep; keep the result and reuse it.

    w1: (hidden, hidden), w2: (hidden, output)  -- i.e. PyTorch weight.T --
    are cast to the MXU input dtype (bf16 by default for v6e/v7x); biases are
    reshaped to (1, F) and kept in f32 (bias/ELU/ReLU math stays f32).
    """
    return (jnp.asarray(w1, matmul_dtype),
            jnp.asarray(b1, jnp.float32).reshape(1, -1),
            jnp.asarray(w2, matmul_dtype),
            jnp.asarray(b2, jnp.float32).reshape(1, -1))


@functools.partial(jax.jit, static_argnames=("block_rows",))
def noise_predictor(x, w1, b1, w2, b2, *, block_rows=512):
    """x: (B, hidden); params as returned by prepare_params -> (B, output)."""
    B, H = x.shape
    O = w2.shape[1]

    # Row-tile size: multiple of 8, at most block_rows, and guaranteeing at
    # least 2 grid steps when B > 8 so the parallel axis uses both v7x TCs.
    block_rows = max(8, _round_up(block_rows, 8))
    TB = min(block_rows, _round_up(B, 8))
    if B > 8:
        TB = min(TB, _round_up((_round_up(B, 8) + 1) // 2, 8))
    grid = pl.cdiv(B, TB)          # ragged: last block is a boundary block

    return pl.pallas_call(
        _noise_predictor_kernel,
        out_shape=jax.ShapeDtypeStruct((B, O), x.dtype),
        grid_spec=pltpu.PrefetchScalarGridSpec(
            num_scalar_prefetch=0,
            grid=(grid,),                                   # batch tiles only
            in_specs=[
                pl.BlockSpec((TB, H), lambda i: (i, 0)),    # x rows per tile
                pl.BlockSpec((H, H), lambda i: (0, 0)),     # w1: VMEM-resident
                pl.BlockSpec((1, H), lambda i: (0, 0)),     # b1: VMEM-resident
                pl.BlockSpec((H, O), lambda i: (0, 0)),     # w2: VMEM-resident
                pl.BlockSpec((1, O), lambda i: (0, 0)),     # b2: VMEM-resident
            ],
            out_specs=pl.BlockSpec((TB, O), lambda i: (i, 0)),
        ),
        compiler_params=pltpu.CompilerParams(
            # Parallel batch axis -> sharded across both TCs on v7x.
            dimension_semantics=("parallel",),
        ),
    )(x, w1, b1, w2, b2)


def noise_predictor_ref(x, w1, b1, w2, b2):
    """Pure-JAX reference for the same forward pass (f32 params)."""
    h = x @ w1 + b1
    h = jnp.where(h > 0, h, jnp.expm1(jnp.minimum(h, 0.0)))   # ELU(alpha=1)
    y = h @ w2 + b2
    return jnp.maximum(y, 0.0)                                # ReLU


if __name__ == "__main__":
    hidden_dim, output_dim, batch = 32, 16, 8

    key = jax.random.PRNGKey(0)
    kx, kw1, kb1, kw2, kb2 = jax.random.split(key, 5)

    x = jax.random.normal(kx, (batch, hidden_dim), dtype=jnp.float32)
    # Deterministic synthetic parameters (PyTorch-style fan_in scaling).
    bound = 1.0 / (hidden_dim ** 0.5)
    w1 = jax.random.uniform(kw1, (hidden_dim, hidden_dim), jnp.float32,
                            -bound, bound)
    b1 = jax.random.uniform(kb1, (hidden_dim,), jnp.float32, -bound, bound)
    w2 = jax.random.uniform(kw2, (hidden_dim, output_dim), jnp.float32,
                            -bound, bound)
    b2 = jax.random.uniform(kb2, (output_dim,), jnp.float32, -bound, bound)

    ref = noise_predictor_ref(x, w1, b1, w2, b2)

    # f32 matmul-input path: tight tolerance vs the reference (single tile).
    p32 = prepare_params(w1, b1, w2, b2, matmul_dtype=jnp.float32)
    out32 = jax.block_until_ready(noise_predictor(x, *p32))
    assert out32.shape == (batch, output_dim)
    assert jnp.allclose(out32, ref, atol=1e-5, rtol=1e-5)

    # Default bf16 matmul-input path (f32 accumulation): looser tolerance.
    pbf16 = prepare_params(w1, b1, w2, b2)
    outbf = jax.block_until_ready(noise_predictor(x, *pbf16))
    assert outbf.shape == (batch, output_dim)
    assert jnp.allclose(outbf, ref, atol=5e-2, rtol=5e-2)

    # Ragged, multi-tile batch: exercises the parallel grid + boundary block.
    x2 = jax.random.normal(jax.random.PRNGKey(1), (300, hidden_dim),
                           dtype=jnp.float32)
    out2 = jax.block_until_ready(noise_predictor(x2, *p32))
    ref2 = noise_predictor_ref(x2, w1, b1, w2, b2)
    assert out2.shape == (300, output_dim)
    assert jnp.allclose(out2, ref2, atol=1e-5, rtol=1e-5)

    print("KERNEL_OK")
</pallas_src>

<mosaic_0001>
module attributes {stable_mosaic.version = 11 : i64} {
  func.func @_noise_predictor_kernel(%arg0: i32, %arg1: memref<8x32xf32, #tpu.memory_space<vmem>>, %arg2: memref<32x32xf32, #tpu.memory_space<vmem>>, %arg3: memref<1x32xf32, #tpu.memory_space<vmem>>, %arg4: memref<32x16xf32, #tpu.memory_space<vmem>>, %arg5: memref<1x16xf32, #tpu.memory_space<vmem>>, %arg6: memref<8x16xf32, #tpu.memory_space<vmem>>) attributes {dimension_semantics = [#tpu.dimension_semantics<parallel>], iteration_bounds = array<i64: 1>, scalar_prefetch = 0 : i64, scratch_operands = 0 : i64, tpu.core_type = #tpu.core_type<tc>, window_params = [{transform_indices = @transform_0, window_bounds = array<i64: 8, 32>}, {pipeline_mode = #tpu.pipeline_mode<synchronous>, transform_indices = @transform_1, window_bounds = array<i64: 32, 32>}, {pipeline_mode = #tpu.pipeline_mode<synchronous>, transform_indices = @transform_2, window_bounds = array<i64: 1, 32>}, {pipeline_mode = #tpu.pipeline_mode<synchronous>, transform_indices = @transform_3, window_bounds = array<i64: 32, 16>}, {pipeline_mode = #tpu.pipeline_mode<synchronous>, transform_indices = @transform_4, window_bounds = array<i64: 1, 16>}, {transform_indices = @transform_5, window_bounds = array<i64: 8, 16>}]} {
    %c0 = arith.constant 0 : index
    %c0_0 = arith.constant 0 : index
    %0 = vector.load %arg1[%c0, %c0_0] : memref<8x32xf32, #tpu.memory_space<vmem>>, vector<8x32xf32>
    %c0_1 = arith.constant 0 : index
    %c0_2 = arith.constant 0 : index
    %1 = vector.load %arg2[%c0_1, %c0_2] : memref<32x32xf32, #tpu.memory_space<vmem>>, vector<32x32xf32>
    %cst = arith.constant dense<0.000000e+00> : vector<8x32xf32>
    %2 = tpu.matmul %0, %1, %cst {dimension_numbers = #tpu.dot_dimension_numbers<[1], [0], [0], [1], [0, 0, 1, 1], [], []>} : vector<8x32xf32>, vector<32x32xf32>, vector<8x32xf32> -> vector<8x32xf32>
    %c0_3 = arith.constant 0 : index
    %c0_4 = arith.constant 0 : index
    %3 = vector.load %arg3[%c0_3, %c0_4] : memref<1x32xf32, #tpu.memory_space<vmem>>, vector<1x32xf32>
    %4 = vector.broadcast %3 : vector<1x32xf32> to vector<8x32xf32>
    %5 = arith.addf %2, %4 : vector<8x32xf32>
    %cst_5 = arith.constant 0.000000e+00 : f32
    %6 = vector.broadcast %cst_5 : f32 to vector<8x32xf32>
    %7 = arith.cmpf ogt, %5, %6 : vector<8x32xf32>
    %cst_6 = arith.constant 0.000000e+00 : f32
    %8 = vector.broadcast %cst_6 : f32 to vector<8x32xf32>
    %9 = arith.minimumf %5, %8 : vector<8x32xf32>
    %10 = math.exp %9 : vector<8x32xf32>
    %cst_7 = arith.constant 1.000000e+00 : f32
    %11 = vector.broadcast %cst_7 : f32 to vector<8x32xf32>
    %12 = arith.subf %10, %11 : vector<8x32xf32>
    %13 = arith.select %7, %5, %12 : vector<8x32xi1>, vector<8x32xf32>
    %c0_8 = arith.constant 0 : index
    %c0_9 = arith.constant 0 : index
    %14 = vector.load %arg4[%c0_8, %c0_9] : memref<32x16xf32, #tpu.memory_space<vmem>>, vector<32x16xf32>
    %cst_10 = arith.constant dense<0.000000e+00> : vector<8x16xf32>
    %15 = tpu.matmul %13, %14, %cst_10 {dimension_numbers = #tpu.dot_dimension_numbers<[1], [0], [0], [1], [0, 0, 1, 1], [], []>} : vector<8x32xf32>, vector<32x16xf32>, vector<8x16xf32> -> vector<8x16xf32>
    %c0_11 = arith.constant 0 : index
    %c0_12 = arith.constant 0 : index
    %16 = vector.load %arg5[%c0_11, %c0_12] : memref<1x16xf32, #tpu.memory_space<vmem>>, vector<1x16xf32>
    %17 = vector.broadcast %16 : vector<1x16xf32> to vector<8x16xf32>
    %18 = arith.addf %15, %17 : vector<8x16xf32>
    %cst_13 = arith.constant 0.000000e+00 : f32
    %19 = vector.broadcast %cst_13 : f32 to vector<8x16xf32>
    %20 = arith.maximumf %18, %19 : vector<8x16xf32>
    %c0_14 = arith.constant 0 : index
    %c0_15 = arith.constant 0 : index
    %21 = vector.load %arg6[%c0_14, %c0_15] : memref<8x16xf32, #tpu.memory_space<vmem>>, vector<8x16xf32>
    tpu.vector_store %arg6[%c0_14, %c0_15], %20 {strides = array<i32>} : memref<8x16xf32, #tpu.memory_space<vmem>>, vector<8x16xf32>,
    return
  }
  func.func @transform_0(%arg0: i32) -> (i32, i32) {
    %c0_i32 = arith.constant 0 : i32
    %c0_i32_0 = arith.constant 0 : i32
    return %arg0, %c0_i32 : i32, i32
  }
  func.func @transform_1(%arg0: i32) -> (i32, i32) {
    %c0_i32 = arith.constant 0 : i32
    %c0_i32_0 = arith.constant 0 : i32
    %c0_i32_1 = arith.constant 0 : i32
    return %c0_i32, %c0_i32_0 : i32, i32
  }
  func.func @transform_2(%arg0: i32) -> (i32, i32) {
    %c0_i32 = arith.constant 0 : i32
    %c0_i32_0 = arith.constant 0 : i32
    %c0_i32_1 = arith.constant 0 : i32
    return %c0_i32, %c0_i32_0 : i32, i32
  }
  func.func @transform_3(%arg0: i32) -> (i32, i32) {
    %c0_i32 = arith.constant 0 : i32
    %c0_i32_0 = arith.constant 0 : i32
    %c0_i32_1 = arith.constant 0 : i32
    return %c0_i32, %c0_i32_0 : i32, i32
  }
  func.func @transform_4(%arg0: i32) -> (i32, i32) {
    %c0_i32 = arith.constant 0 : i32
    %c0_i32_0 = arith.constant 0 : i32
    %c0_i32_1 = arith.constant 0 : i32
    return %c0_i32, %c0_i32_0 : i32, i32
  }
  func.func @transform_5(%arg0: i32) -> (i32, i32) {
    %c0_i32 = arith.constant 0 : i32
    %c0_i32_0 = arith.constant 0 : i32
    return %arg0, %c0_i32 : i32, i32
  }
}

</mosaic_0001>

<llo_original>
// kernel: noise_predictor.1
$region0: #{noise_predictor.1}
  #allocation0 [shape = 'u32[]', space=smem, size = 0x4, offset = 0x4, fixed_abs, tag = 'smem constant byte address 0x4 - core index']
  #allocation1 [shape = 'u32[144,128]{1,0:T(1,128)}', space=vmem, size = 0x12000, scoped, tag = 'internal scratch']
  %s0 = inlined_call_operand.vmem [shape: f32[8,32], index: 0, kind: input, shape index: {}]
  %s1 = inlined_call_operand.vmem [shape: f32[32,32], index: 1, kind: input, shape index: {}]
  %s2 = inlined_call_operand.vmem [shape: f32[1,32], index: 2, kind: input, shape index: {}]
  %s3 = inlined_call_operand.vmem [shape: f32[32,16], index: 3, kind: input, shape index: {}]
  %s4 = inlined_call_operand.vmem [shape: f32[1,16], index: 4, kind: input, shape index: {}]
  %s5 = inlined_call_operand.hbm [shape: f32[8,16], index: 5, kind: output, shape index: {}]
  %s6 = sld [smem:[#allocation0]]
  $region30: #{noise_predictor.1} parent=0
    _
  %s8 = ssub.s32 1, %s6
  %s9 = scalar_select 0, %s8, %s6
  $region1: #{noise_predictor.1} parent=0
    #allocation2 [shape = 'u8[4096]{0}', space=vmem, size = 0x1000, scoped, tag = 'output window, operand 0, single buffered']
    #allocation3 [shape = 's32[1]{0}', space=sflag, size = 0x4, scoped, tag = 'scoped memory for noise_predictor.1']
    %10 = vsyncpa [#allocation3], 0
    // Predicated region
    $region2: #{noise_predictor.1} parent=1 // pred_check
      _
    $region3: #{noise_predictor.1} parent=1 // pred_check_branch
      %12 = sbr.rel (0) target = $region5
    $region4: #{noise_predictor.1} parent=1 // pred_region
      _
    $region5: #{noise_predictor.1} parent=1 // pred_fallthru
      _
    // Predicated region
    $region6: #{noise_predictor.1} parent=1 // pred_check
      _
    $region7: #{noise_predictor.1} parent=1 // pred_check_branch
      %14 = sbr.rel (0) target = $region9
    $region8: #{noise_predictor.1} parent=1 // pred_region
      _
    $region9: #{noise_predictor.1} parent=1 // pred_fallthru
      _
    // Predicated region
    $region10: #{noise_predictor.1} parent=1 // pred_check
      _
    $region11: #{noise_predictor.1} parent=1 // pred_check_branch
      %16 = sbr.rel (0) target = $region13
    $region12: #{noise_predictor.1} parent=1 // pred_region
      _
    $region13: #{noise_predictor.1} parent=1 // pred_fallthru
      _
    // Predicated region
    $region14: #{noise_predictor.1} parent=1 // pred_check
      _
    $region15: #{noise_predictor.1} parent=1 // pred_check_branch
      %18 = sbr.rel (0) target = $region17
    $region16: #{noise_predictor.1} parent=1 // pred_region
      _
    $region17: #{noise_predictor.1} parent=1 // pred_fallthru
      _
    // Predicated region
    $region18: #{noise_predictor.1} parent=1 // pred_check
      _
    $region19: #{noise_predictor.1} parent=1 // pred_check_branch
      %20 = sbr.rel (0) target = $region21
    $region20: #{noise_predictor.1} parent=1 // pred_region
      _
    $region21: #{noise_predictor.1} parent=1 // pred_fallthru
      _
    %v21 = vld [vmem:[%s0] sm:$0xff]
    %v22 = vld [vmem:[%s1] sm:$0xff]
    %v23 = vld [vmem:[%s1 + $0x8] sm:$0xff]
    %v24 = vld [vmem:[%s1 + $0x10] sm:$0xff]
    %v25 = vld [vmem:[%s1 + $0x18] sm:$0xff]
    %v26 = vld [vmem:[%s2] sm:$0x1]
    %v28 = vlaneseq
    %v29 = vshrl.u32 %v28, 7
    %v30 = vsub.s32 0, %v29
    %v31 = vrot.slane %v26, %v30
    %vm33 = vcmask 261120
    %v35 = vsel %vm33, %v21, 0
    %37 = vmatprep.subr.mxu0 0.0
    %38 = vmatpush1.msra.mxu0 %v22
    %39 = vmatprep.subr.mxu0 0.0
    %40 = vmatpush1.msra.mxu0 %v23
    %41 = vmatprep.subr.mxu0 0.0
    %42 = vmatpush1.msra.mxu0 %v24
    %43 = vmatprep.subr.mxu0 0.0
    %44 = vmatpush1.msra.mxu0 %v25
    %45 = vmatprep.subr.mxu0 0.0
    %46 = vmatpush1.msra.mxu0 0.0
    %47 = vmatprep.subr.mxu0 0.0
    %48 = vmatpush1.msra.mxu0 0.0
    %49 = vmatprep.subr.mxu0 0.0
    %50 = vmatpush1.msra.mxu0 0.0
    %51 = vmatprep.subr.mxu0 0.0
    %52 = vmatpush1.msra.mxu0 0.0
    %53 = vmatprep.subr.mxu0 0.0
    %54 = vmatpush1.msra.mxu0 0.0
    %55 = vmatprep.subr.mxu0 0.0
    %56 = vmatpush1.msra.mxu0 0.0
    %57 = vmatprep.subr.mxu0 0.0
    %58 = vmatpush1.msra.mxu0 0.0
    %59 = vmatprep.subr.mxu0 0.0
    %60 = vmatpush1.msra.mxu0 0.0
    %61 = vmatprep.subr.mxu0 0.0
    %62 = vmatpush1.msra.mxu0 0.0
    %63 = vmatprep.subr.mxu0 0.0
    %64 = vmatpush1.msra.mxu0 0.0
    %65 = vmatprep.subr.mxu0 0.0
    %66 = vmatpush1.msra.mxu0 0.0
    %67 = vmatprep.subr.mxu0 0.0
    %68 = vmatpush1.msra.mxu0 0.0
    %69 = vmatprep.subr.mxu0 0.0
    %70 = vmatpush1.msra.mxu0 0.0
    %71 = vmatprep.subr.mxu0 0.0
    %72 = vmatpush1.msra.mxu0 0.0
    %73 = vmatprep.subr.mxu0 0.0
    %74 = vmatpush1.msra.mxu0 0.0
    %75 = vmatprep.subr.mxu0 0.0
    %76 = vmatpush1.msra.mxu0 0.0
    %77 = vmatprep.subr.mxu0 0.0
    %78 = vmatpush1.msra.mxu0 0.0
    %79 = vmatprep.subr.mxu0 0.0
    %80 = vmatpush1.msra.mxu0 0.0
    %81 = vmatprep.subr.mxu0 0.0
    %82 = vmatpush1.msra.mxu0 0.0
    %83 = vmatprep.subr.mxu0 0.0
    %84 = vmatpush1.msra.mxu0 0.0
    %85 = vmatprep.subr.mxu0 0.0
    %86 = vmatpush1.msra.mxu0 0.0
    %87 = vmatprep.subr.mxu0 0.0
    %88 = vmatpush1.msra.mxu0 0.0
    %89 = vmatprep.subr.mxu0 0.0
    %90 = vmatpush1.msra.mxu0 0.0
    %91 = vmatprep.subr.mxu0 0.0
    %92 = vmatpush1.msra.mxu0 0.0
    %93 = vmatprep.subr.mxu0 0.0
    %94 = vmatpush1.msra.mxu0 0.0
    %95 = vmatprep.subr.mxu0 0.0
    %96 = vmatpush1.msra.mxu0 0.0
    %97 = vmatprep.subr.mxu0 0.0
    %98 = vmatpush1.msra.mxu0 0.0
    %99 = vmatprep.subr.mxu0 0.0
    %100 = vmatpush1.msra.mxu0 0.0
    %101 = vmatprep.mubr.f32.mxu0 0.0
    %102 = vmatmul.mubr.f32.gmra.mrb[0].mxu0 %v35
    %v103 = vpop.f32.mrb[0].mxu0
    %v104 = vadd.f32 %v31, %v103
    %v105 = vpop.f32.mrb[0].mxu0
    %106 = vdwg.mxu0
    %vm107 = vcmp.gt.f32.partialorder %v104, 0.0
    %v108 = vmin.f32 %v104, 0.0
    %v109 = vmul.f32 %v108, 1.442695
    %v110 = vpow.pop %v109
    %v111 = vsub.f32 %v110, 1.0
    %v112 = vsel %vm107, %v104, %v111
    %v113 = vld [vmem:[%s3] sm:$0xff]
    %v114 = vld [vmem:[%s3 + $0x8] sm:$0xff]
    %v115 = vld [vmem:[%s3 + $0x10] sm:$0xff]
    %v116 = vld [vmem:[%s3 + $0x18] sm:$0xff]
    %v117 = vld [vmem:[%s4] sm:$0x1]
    %v119 = vlaneseq
    %v120 = vshrl.u32 %v119, 7
    %v121 = vsub.s32 0, %v120
    %v122 = vrot.slane %v117, %v121
    %v125 = vsel %vm33, %v112, 0
    %127 = vmatprep.subr.mxu0 0.0
    %128 = vmatpush1.msra.mxu0 %v113
    %129 = vmatprep.subr.mxu0 0.0
    %130 = vmatpush1.msra.mxu0 %v114
    %131 = vmatprep.subr.mxu0 0.0
    %132 = vmatpush1.msra.mxu0 %v115
    %133 = vmatprep.subr.mxu0 0.0
    %134 = vmatpush1.msra.mxu0 %v116
    %135 = vmatprep.subr.mxu0 0.0
    %136 = vmatpush1.msra.mxu0 0.0
    %137 = vmatprep.subr.mxu0 0.0
    %138 = vmatpush1.msra.mxu0 0.0
    %139 = vmatprep.subr.mxu0 0.0
    %140 = vmatpush1.msra.mxu0 0.0
    %141 = vmatprep.subr.mxu0 0.0
    %142 = vmatpush1.msra.mxu0 0.0
    %143 = vmatprep.subr.mxu0 0.0
    %144 = vmatpush1.msra.mxu0 0.0
    %145 = vmatprep.subr.mxu0 0.0
    %146 = vmatpush1.msra.mxu0 0.0
    %147 = vmatprep.subr.mxu0 0.0
    %148 = vmatpush1.msra.mxu0 0.0
    %149 = vmatprep.subr.mxu0 0.0
    %150 = vmatpush1.msra.mxu0 0.0
    %151 = vmatprep.subr.mxu0 0.0
    %152 = vmatpush1.msra.mxu0 0.0
    %153 = vmatprep.subr.mxu0 0.0
    %154 = vmatpush1.msra.mxu0 0.0
    %155 = vmatprep.subr.mxu0 0.0
    %156 = vmatpush1.msra.mxu0 0.0
    %157 = vmatprep.subr.mxu0 0.0
    %158 = vmatpush1.msra.mxu0 0.0
    %159 = vmatprep.subr.mxu0 0.0
    %160 = vmatpush1.msra.mxu0 0.0
    %161 = vmatprep.subr.mxu0 0.0
    %162 = vmatpush1.msra.mxu0 0.0
    %163 = vmatprep.subr.mxu0 0.0
    %164 = vmatpush1.msra.mxu0 0.0
    %165 = vmatprep.subr.mxu0 0.0
    %166 = vmatpush1.msra.mxu0 0.0
    %167 = vmatprep.subr.mxu0 0.0
    %168 = vmatpush1.msra.mxu0 0.0
    %169 = vmatprep.subr.mxu0 0.0
    %170 = vmatpush1.msra.mxu0 0.0
    %171 = vmatprep.subr.mxu0 0.0
    %172 = vmatpush1.msra.mxu0 0.0
    %173 = vmatprep.subr.mxu0 0.0
    %174 = vmatpush1.msra.mxu0 0.0
    %175 = vmatprep.subr.mxu0 0.0
    %176 = vmatpush1.msra.mxu0 0.0
    %177 = vmatprep.subr.mxu0 0.0
    %178 = vmatpush1.msra.mxu0 0.0
    %179 = vmatprep.subr.mxu0 0.0
    %180 = vmatpush1.msra.mxu0 0.0
    %181 = vmatprep.subr.mxu0 0.0
    %182 = vmatpush1.msra.mxu0 0.0
    %183 = vmatprep.subr.mxu0 0.0
    %184 = vmatpush1.msra.mxu0 0.0
    %185 = vmatprep.subr.mxu0 0.0
    %186 = vmatpush1.msra.mxu0 0.0
    %187 = vmatprep.subr.mxu0 0.0
    %188 = vmatpush1.msra.mxu0 0.0
    %189 = vmatprep.subr.mxu0 0.0
    %190 = vmatpush1.msra.mxu0 0.0
    %191 = vmatprep.mubr.f32.mxu0 0.0
    %192 = vmatmul.mubr.f32.gmra.mrb[0].mxu0 %v125
    %v193 = vpop.f32.mrb[0].mxu0
    %v194 = vadd.f32 %v122, %v193
    %v195 = vpop.f32.mrb[0].mxu0
    %196 = vdwg.mxu0
    %v197 = vmax.f32 %v194, 0.0
    %vm198 = vcmask 130048
    %199 = vst.msk [vmem:[#allocation2] sm:$0xff] %vm198, %v197
    // Predicated region
    $region22: #{noise_predictor.1} parent=1 // pred_check
      _
    $region23: #{noise_predictor.1} parent=1 // pred_check_branch
      %201 = sbr.rel (0) target = $region25
    $region24: #{noise_predictor.1} parent=1 // pred_region
      %s203 = ssub.s32 128, 128
      %204 = vsyncadd [#allocation3], %s203
      %s206 = sshll.u32 [#allocation2], 4
      %s207 = int_to_ptr.vmem [resolvable:$true] %s206
      %209 = dma.vmem_to_hbm [thread:$0]  %s207, 128, %s5, [#allocation3]
    $region25: #{noise_predictor.1} parent=1 // pred_fallthru
      _
    // Predicated region
    $region26: #{noise_predictor.1} parent=1 // pred_check
      _
    $region27: #{noise_predictor.1} parent=1 // pred_check_branch
      %211 = sbr.rel (0) target = $region29
    $region28: #{noise_predictor.1} parent=1 // pred_region
      %212 = dma.done [#allocation3], 128
    $region29: #{noise_predictor.1} parent=1 // pred_fallthru
      _
    %213 = vsyncpa [#allocation3], 1

</llo_original>
